<compile_context>
chip_gen: v7x
topology: tpu7x:2x2x1
jax: 0.10.0
libtpu: 0.0.40
codegen_flags: <defaults>
</compile_context>

<pallas_src>
import functools

import jax
import jax.numpy as jnp
from jax.experimental import pallas as pl
from jax.experimental.pallas import tpu as pltpu

_LANES = 128


def _round_up(x: int, m: int) -> int:
    return ((x + m - 1) // m) * m


def _pair_ce_partial_kernel(x_ref, o_ref, *, n_cand: int, total: int):
    """Partial sum of log-terms over one lane-dense (rows, 128) slab block."""
    i = pl.program_id(0)
    x = x_ref[...].astype(jnp.float32)                 # (rows, 128) in f32
    rows, lanes = x.shape

    row = jax.lax.broadcasted_iota(jnp.int32, (rows, lanes), 0)
    lane = jax.lax.broadcasted_iota(jnp.int32, (rows, lanes), 1)
    flat = (i * rows + row) * lanes + lane             # flat index into [B*N]

    valid = flat < total                               # mask out padding lanes
    is_pos = (flat % n_cand) == 0                      # column 0 of each sample

    # Select-then-log: exactly ONE EUP log per element; the selects are VPU
    # ops that co-issue for free.  Padding selects 1.0 -> log(1) = 0.
    arg = jnp.where(is_pos, x, 1.0 - x)
    arg = jnp.where(valid, arg, 1.0)

    partial = jnp.sum(jnp.log(arg))                    # single full-array reduce
    o_ref[...] = jnp.reshape(partial, (1, 1))


def pair_cross_entropy(targets_score: jax.Array, *, block_rows: int = 1024) -> jax.Array:
    """targets_score: [B, N] with values in (0, 1). Returns scalar f32 loss.

    Column 0 is the positive-item score; columns 1..N-1 are negatives.
    """
    assert targets_score.ndim == 2
    B, N = targets_score.shape
    total = B * N

    # Lane-dense slab: [R, 128] rows, padded so rows are a multiple of the tile.
    r = pl.cdiv(total, _LANES)
    tr = min(block_rows, _round_up(r, 8))              # tile rows (multiple of 8)
    r_pad = _round_up(r, tr)
    num_blocks = r_pad // tr

    flat = jnp.ravel(targets_score)                    # keep caller dtype for DMA
    pad = r_pad * _LANES - total
    if pad:
        flat = jnp.concatenate(
            [flat, jnp.full((pad,), 0.5, dtype=flat.dtype)])
    slab = flat.reshape(r_pad, _LANES)

    kernel = functools.partial(_pair_ce_partial_kernel, n_cand=N, total=total)

    # One partial sum per grid block; independent blocks -> "parallel" axis.
    partials = pl.pallas_call(
        kernel,
        out_shape=jax.ShapeDtypeStruct((num_blocks, 1), jnp.float32),
        grid=(num_blocks,),
        in_specs=[pl.BlockSpec((tr, _LANES), lambda i: (i, 0))],
        out_specs=pl.BlockSpec((1, 1), lambda i: (i, 0)),
        compiler_params=pltpu.CompilerParams(
            dimension_semantics=("parallel",)),
    )(slab)

    # Final reduction + mean over the TRUE batch size (not the padded size).
    return -jnp.sum(partials) / B


def _reference(targets_score: jax.Array) -> jax.Array:
    x = targets_score.astype(jnp.float32)
    pos = jnp.log(x[:, 0])
    neg = jnp.sum(jnp.log(1.0 - x[:, 1:]), axis=1)
    return jnp.mean(-(pos + neg))


if __name__ == "__main__":
    key = jax.random.PRNGKey(0)
    B, N = 8, 8  # batch of 8, 1 positive + 7 negatives per sample
    # scores must lie strictly in (0, 1) for the logs to be finite
    targets_score = jax.random.uniform(
        key, (B, N), dtype=jnp.float32, minval=0.05, maxval=0.95
    )

    loss = pair_cross_entropy(targets_score)
    jax.block_until_ready(loss)

    ref = _reference(targets_score)
    assert jnp.allclose(loss, ref, rtol=1e-5, atol=1e-5), (loss, ref)

    # larger, ragged shape to exercise padding + multi-block grid
    B2, N2 = 300, 37
    ts2 = jax.random.uniform(
        jax.random.PRNGKey(1), (B2, N2), dtype=jnp.float32, minval=0.05, maxval=0.95
    )
    loss2 = pair_cross_entropy(ts2, block_rows=32)
    jax.block_until_ready(loss2)
    assert jnp.allclose(loss2, _reference(ts2), rtol=1e-5, atol=1e-5), (
        loss2, _reference(ts2))

    print("KERNEL_OK")
</pallas_src>

<mosaic_0001>
module attributes {stable_mosaic.version = 11 : i64} {
  func.func @_pair_ce_partial_kernel(%arg0: i32, %arg1: memref<8x128xf32, #tpu.memory_space<vmem>>, %arg2: memref<1x1xf32, #tpu.memory_space<vmem>>) attributes {dimension_semantics = [#tpu.dimension_semantics<parallel>], iteration_bounds = array<i64: 1>, scalar_prefetch = 0 : i64, scratch_operands = 0 : i64, tpu.core_type = #tpu.core_type<tc>, window_params = [{transform_indices = @transform_0, window_bounds = array<i64: 8, 128>}, {transform_indices = @transform_1, window_bounds = array<i64: 1, 1>}]} {
    %c0 = arith.constant 0 : index
    %c0_0 = arith.constant 0 : index
    %0 = vector.load %arg1[%c0, %c0_0] : memref<8x128xf32, #tpu.memory_space<vmem>>, vector<8x128xf32>
    %1 = tpu.iota {dimensions = array<i32: 0>} : vector<8x128xi32>
    %2 = tpu.iota {dimensions = array<i32: 1>} : vector<8x128xi32>
    %c8_i32 = arith.constant 8 : i32
    %3 = arith.muli %arg0, %c8_i32 : i32
    %4 = vector.broadcast %3 : i32 to vector<8x128xi32>
    %5 = arith.addi %4, %1 : vector<8x128xi32>
    %c128_i32 = arith.constant 128 : i32
    %6 = vector.broadcast %c128_i32 : i32 to vector<8x128xi32>
    %7 = arith.muli %5, %6 : vector<8x128xi32>
    %8 = arith.addi %7, %2 : vector<8x128xi32>
    %c64_i32 = arith.constant 64 : i32
    %9 = vector.broadcast %c64_i32 : i32 to vector<8x128xi32>
    %10 = arith.cmpi slt, %8, %9 : vector<8x128xi32>
    %c8_i32_1 = arith.constant 8 : i32
    %c0_i32 = arith.constant 0 : i32
    %11 = arith.cmpi eq, %c8_i32_1, %c0_i32 : i32
    %c1_i32 = arith.constant 1 : i32
    %12 = arith.select %11, %c1_i32, %c8_i32_1 : i32
    %13 = vector.broadcast %12 : i32 to vector<8x128xi32>
    %14 = arith.remsi %8, %13 : vector<8x128xi32>
    %c0_i32_2 = arith.constant 0 : i32
    %15 = vector.broadcast %c0_i32_2 : i32 to vector<8x128xi32>
    %16 = arith.cmpi ne, %14, %15 : vector<8x128xi32>
    %c0_i32_3 = arith.constant 0 : i32
    %17 = vector.broadcast %c0_i32_3 : i32 to vector<8x128xi32>
    %18 = arith.cmpi slt, %14, %17 : vector<8x128xi32>
    %c0_i32_4 = arith.constant 0 : i32
    %19 = arith.cmpi slt, %12, %c0_i32_4 : i32
    %20 = vector.broadcast %19 : i1 to vector<8x128xi1>
    %21 = vector.broadcast %20 : vector<8x128xi1> to vector<8x128xi1>
    %22 = arith.xori %18, %21 : vector<8x128xi1>
    %23 = arith.andi %22, %16 : vector<8x128xi1>
    %24 = vector.broadcast %12 : i32 to vector<8x128xi32>
    %25 = arith.addi %14, %24 : vector<8x128xi32>
    %26 = arith.select %23, %25, %14 : vector<8x128xi1>, vector<8x128xi32>
    %c0_i32_5 = arith.constant 0 : i32
    %27 = vector.broadcast %c0_i32_5 : i32 to vector<8x128xi32>
    %28 = arith.cmpi eq, %26, %27 : vector<8x128xi32>
    %cst = arith.constant 1.000000e+00 : f32
    %29 = vector.broadcast %cst : f32 to vector<8x128xf32>
    %30 = arith.subf %29, %0 : vector<8x128xf32>
    %31 = arith.select %28, %0, %30 : vector<8x128xi1>, vector<8x128xf32>
    %cst_6 = arith.constant 1.000000e+00 : f32
    %32 = vector.broadcast %cst_6 : f32 to vector<8x128xf32>
    %33 = arith.select %10, %31, %32 : vector<8x128xi1>, vector<8x128xf32>
    %34 = math.log %33 : vector<8x128xf32>
    %35 = vector.shape_cast %34 : vector<8x128xf32> to vector<1x8x128xf32>
    %cst_7 = arith.constant dense<0.000000e+00> : vector<1xf32>
    %36 = vector.multi_reduction <add>, %35, %cst_7 [1, 2] : vector<1x8x128xf32> to vector<1xf32>
    %37 = vector.shape_cast %36 : vector<1xf32> to vector<1x1x1xf32>
    %38 = vector.extract %37[0, 0, 0] : f32 from vector<1x1x1xf32>
    %39 = vector.broadcast %38 : f32 to vector<1x1xf32>
    %c0_8 = arith.constant 0 : index
    %c0_9 = arith.constant 0 : index
    %40 = vector.load %arg2[%c0_8, %c0_9] : memref<1x1xf32, #tpu.memory_space<vmem>>, vector<1x1xf32>
    tpu.vector_store %arg2[%c0_8, %c0_9], %39 {strides = array<i32>} : memref<1x1xf32, #tpu.memory_space<vmem>>, vector<1x1xf32>,
    return
  }
  func.func @transform_0(%arg0: i32) -> (i32, i32) {
    %c0_i32 = arith.constant 0 : i32
    %c0_i32_0 = arith.constant 0 : i32
    return %arg0, %c0_i32 : i32, i32
  }
  func.func @transform_1(%arg0: i32) -> (i32, i32) {
    %c0_i32 = arith.constant 0 : i32
    %c0_i32_0 = arith.constant 0 : i32
    return %arg0, %c0_i32 : i32, i32
  }
}

</mosaic_0001>

<llo_original>
// kernel: tpu_custom_call.1
$region0: #{tpu_custom_call.1}
  #allocation0 [shape = 'u32[]', space=smem, size = 0x4, offset = 0x4, fixed_abs, tag = 'smem constant byte address 0x4 - core index']
  #allocation1 [shape = 'u32[144,128]{1,0:T(1,128)}', space=vmem, size = 0x12000, scoped, tag = 'internal scratch']
  %s0 = inlined_call_operand.hbm [shape: f32[8,128], index: 0, kind: input, shape index: {}]
  %s1 = inlined_call_operand.hbm [shape: f32[1,1], index: 1, kind: output, shape index: {}]
  %s2 = sld [smem:[#allocation0]]
  $region18: #{tpu_custom_call.1} parent=0
    _
  %s4 = ssub.s32 1, %s2
  %s5 = scalar_select 0, %s4, %s2
  $region1: #{tpu_custom_call.1} parent=0
    #allocation2 [shape = 'u8[4096]{0}', space=vmem, size = 0x1000, scoped, tag = 'input window, operand 0, single buffered']
    #allocation3 [shape = 's32[1]{0}', space=sflag, size = 0x4, scoped, tag = 'scoped memory for tpu_custom_call.1']
    #allocation4 [shape = 's32[1]{0}', space=sflag, size = 0x4, scoped, tag = 'scoped memory for tpu_custom_call.1']
    #allocation5 [shape = 'u8[512]{0}', space=vmem, size = 0x400, scoped, tag = 'output window, operand 0, single buffered']
    %6 = vsyncpa [#allocation3], 0
    %7 = vsyncpa [#allocation4], 0
    // Predicated region
    $region2: #{tpu_custom_call.1} parent=1 // pred_check
      _
    $region3: #{tpu_custom_call.1} parent=1 // pred_check_branch
      %9 = sbr.rel (0) target = $region5
    $region4: #{tpu_custom_call.1} parent=1 // pred_region
      %s11 = ssub.s32 128, 128
      %12 = vsyncadd [#allocation3], %s11
      %s14 = sshll.u32 [#allocation2], 4
      %s15 = int_to_ptr.vmem [resolvable:$true] %s14
      %17 = dma.hbm_to_vmem [thread:$0]  %s0, 128, %s15, [#allocation3]
    $region5: #{tpu_custom_call.1} parent=1 // pred_fallthru
      _
    // Predicated region
    $region6: #{tpu_custom_call.1} parent=1 // pred_check
      _
    $region7: #{tpu_custom_call.1} parent=1 // pred_check_branch
      %19 = sbr.rel (0) target = $region9
    $region8: #{tpu_custom_call.1} parent=1 // pred_region
      %20 = dma.done [#allocation3], 128
    $region9: #{tpu_custom_call.1} parent=1 // pred_fallthru
      _
    %v21 = vld [vmem:[#allocation2] sm:$0xff]
    %v22 = vlaneseq
    %v23 = vshrl.u32 %v22, 7
    %v24 = vlaneseq
    %v25 = vand.u32 %v24, 127
    %s26 = smul.u32 0, 8
    %v27 = vstv %s26
    %v28 = vadd.s32 %v27, %v23
    %v29 = vmul.u32 %v28, 128
    %v30 = vadd.s32 %v29, %v25
    %vm31 = vcmp.lt.s32.totalorder %v30, 64
    %vm32 = vcmp.lt.s32.totalorder %v30, 0
    %v33 = vsub.s32 0, %v30
    %v34 = vsel %vm32, %v33, %v30
    %v35 = vshrl.u32 %v34, 3
    %v36 = vand.u32 %v34, 7
    %v37 = vsub.s32 0, %v36
    %v38 = vsel %vm32, %v37, %v36
    %vm39 = vcmp.ne.s32.totalorder %v38, 0
    %vm40 = vcmp.lt.s32.totalorder %v38, 0
    %vm41 = vmand %vm40, %vm39
    %v42 = vadd.s32 %v38, 8
    %v43 = vsel %vm41, %v42, %v38
    %vm44 = vcmp.eq.s32.totalorder %v43, 0
    %v45 = vsub.f32 1.0, %v21
    %v46 = vsel %vm44, %v21, %v45
    %v47 = vsel %vm31, %v46, 1.0
    %v48 = vlog2.pop %v47
    %v49 = vmul.f32 %v48, 0.6931472
    %50 = vadd.xlane.f32.xlu0 %v49
    %v51 = vpop.xlane.xlu0 %50
    %v52 = vrot.slane %v51, 4
    %v53 = vadd.f32 %v51, %v52
    %v54 = vrot.slane %v53, 2
    %v55 = vadd.f32 %v53, %v54
    %v56 = vrot.slane %v55, 1
    %v57 = vadd.f32 %v55, %v56
    %s58 = vtos %v57
    %v59 = vstv %s58
    %vm60 = vcmask 0
    %61 = vst.msk [vmem:[#allocation5] sm:$0x1] %vm60, %v59
    // Predicated region
    $region10: #{tpu_custom_call.1} parent=1 // pred_check
      _
    $region11: #{tpu_custom_call.1} parent=1 // pred_check_branch
      %63 = sbr.rel (0) target = $region13
    $region12: #{tpu_custom_call.1} parent=1 // pred_region
      %s65 = ssub.s32 16, 16
      %66 = vsyncadd [#allocation4], %s65
      %s68 = sshll.u32 [#allocation5], 4
      %s69 = int_to_ptr.vmem [resolvable:$true] %s68
      %71 = dma.vmem_to_hbm [thread:$0]  %s69, 16, %s1, [#allocation4]
    $region13: #{tpu_custom_call.1} parent=1 // pred_fallthru
      _
    // Predicated region
    $region14: #{tpu_custom_call.1} parent=1 // pred_check
      _
    $region15: #{tpu_custom_call.1} parent=1 // pred_check_branch
      %73 = sbr.rel (0) target = $region17
    $region16: #{tpu_custom_call.1} parent=1 // pred_region
      %74 = dma.done [#allocation4], 16
    $region17: #{tpu_custom_call.1} parent=1 // pred_fallthru
      _
    %75 = vsyncpa [#allocation3], 1
    %76 = vsyncpa [#allocation4], 1

</llo_original>
